<compile_context>
chip_gen: v5e
topology: v5e:2x2
jax: 0.10.0
libtpu: 0.0.40
codegen_flags: <defaults>
</compile_context>

<pallas_src>
import jax
import jax.numpy as jnp
from jax.experimental import pallas as pl
from jax.experimental.pallas import tpu as pltpu


def _make_self_attention_kernel(tq, s_valid, kv_chunk):
    """Kernel specialized on (query-tile size, #valid key rows, K/V projection chunk)."""

    def kernel(x_ref, wq_ref, bq_ref, wk_ref, bk_ref, wv_ref, bv_ref,
               attn_ref, out_ref, k_vmem, v_vmem):
        qi = pl.program_id(1)

        # --- K/V projection: once per batch element, chunked over S, cached in VMEM ---
        @pl.when(qi == 0)
        def _():
            for start in range(0, s_valid, kv_chunk):
                size = min(kv_chunk, s_valid - start)
                x_c = x_ref[0, start:start + size, :]                      # (size, D) bf16
                k_c = jnp.dot(x_c, wk_ref[...],
                              preferred_element_type=jnp.float32) + bk_ref[...]
                v_c = jnp.dot(x_c, wv_ref[...],
                              preferred_element_type=jnp.float32) + bv_ref[...]
                k_vmem[start:start + size, :] = k_c.astype(k_vmem.dtype)
                v_vmem[start:start + size, :] = v_c.astype(v_vmem.dtype)

        # --- Q projection for this query tile (1/sqrt(d_model) pre-folded into wq/bq) ---
        q_start = pl.multiple_of(qi * tq, tq)
        xq = x_ref[0, pl.ds(q_start, tq), :]                               # (TQ, D) bf16
        q = jnp.dot(xq, wq_ref[...],
                    preferred_element_type=jnp.float32) + bq_ref[...]      # (TQ, D) f32

        # --- scores = q @ k^T : contract D on both operands (flash-attention pattern) ---
        scores = jax.lax.dot_general(
            q.astype(jnp.bfloat16), k_vmem[...],
            dimension_numbers=(((1,), (1,)), ((), ())),
            preferred_element_type=jnp.float32)                            # (TQ, S)

        # dropout (eval mode) == identity, applied before softmax as in the module.

        # --- numerically stable softmax over keys, f32; EUP approx reciprocal ---
        m = jnp.max(scores, axis=-1, keepdims=True)
        e = jnp.exp(scores - m)
        denom = jnp.sum(e, axis=-1, keepdims=True)
        attn = e * pl.reciprocal(denom, approx=True)                       # (TQ, S) f32

        out = jnp.dot(attn.astype(jnp.bfloat16), v_vmem[...],
                      preferred_element_type=jnp.float32)                  # (TQ, D) f32

        attn_ref[0] = attn.astype(attn_ref.dtype)                          # bf16 writeback
        out_ref[0] = out.astype(out_ref.dtype)

    return kernel


def _generation_defaults():
    """(max_tq, vmem_limit_bytes) derived from the TPU generation's VMEM size."""
    try:
        kind = jax.devices()[0].device_kind.lower()
    except Exception:
        kind = ""
    if "v7" in kind:                                   # 64 MiB VMEM per TensorCore
        return 128, 56 * 1024 * 1024
    if any(v in kind for v in ("v4", "v5", "v6")):     # 128 MiB VMEM
        return 256, 96 * 1024 * 1024
    return 128, 48 * 1024 * 1024                       # unknown chip: conservative


def self_attention(x, wq, bq, wk, bk, wv, bv, *, max_tq=None,
                   vmem_limit_bytes=None, kv_chunk=512):
    """x: (B, S, D) float32; weights in PyTorch layout (out, in); biases (D,).

    Returns (attention, out) matching SelfAttention.forward in eval mode.
    `attention` is returned in bfloat16 (halves the dominant (B,S,S) HBM stream);
    `out` is float32.
    """
    B, S, D = x.shape
    def_tq, def_vmem = _generation_defaults()
    if max_tq is None:
        max_tq = def_tq
    if vmem_limit_bytes is None:
        vmem_limit_bytes = def_vmem
    inv_scale = 1.0 / (float(D) ** 0.5)

    # Weights to (in, out); fold the softmax scale into the query projection.
    wq_t = (wq.T * inv_scale).astype(jnp.bfloat16)                         # (D, D)
    bq2 = (bq * inv_scale).reshape(1, D).astype(jnp.float32)
    wk_t = wk.T.astype(jnp.bfloat16)                                       # (D, D)
    bk2 = bk.reshape(1, D).astype(jnp.float32)
    wv_t = wv.T.astype(jnp.bfloat16)                                       # (D, D)
    bv2 = bv.reshape(1, D).astype(jnp.float32)

    x_bf = x.astype(jnp.bfloat16)

    # Query-dimension tiling (keys stay full-length; only queries padded, outputs sliced).
    if S <= max_tq:
        tq, n_q, s_pad = S, 1, S
    else:
        tq = max_tq
        n_q = pl.cdiv(S, tq)
        s_pad = n_q * tq
        x_bf = jnp.pad(x_bf, ((0, 0), (0, s_pad - S), (0, 0)))

    kernel = _make_self_attention_kernel(tq, S, min(kv_chunk, S))

    attn, out = pl.pallas_call(
        kernel,
        out_shape=(
            jax.ShapeDtypeStruct((B, s_pad, S), jnp.bfloat16),
            jax.ShapeDtypeStruct((B, s_pad, D), jnp.float32),
        ),
        grid=(B, n_q),
        in_specs=[
            pl.BlockSpec((1, s_pad, D), lambda b, qi: (b, 0, 0)),          # x (full padded seq)
            pl.BlockSpec((D, D), lambda b, qi: (0, 0)),                    # Wq (scale folded)
            pl.BlockSpec((1, D), lambda b, qi: (0, 0)),                    # bq (scale folded)
            pl.BlockSpec((D, D), lambda b, qi: (0, 0)),                    # Wk
            pl.BlockSpec((1, D), lambda b, qi: (0, 0)),                    # bk
            pl.BlockSpec((D, D), lambda b, qi: (0, 0)),                    # Wv
            pl.BlockSpec((1, D), lambda b, qi: (0, 0)),                    # bv
        ],
        out_specs=(
            pl.BlockSpec((1, tq, S), lambda b, qi: (b, qi, 0)),            # attention (bf16)
            pl.BlockSpec((1, tq, D), lambda b, qi: (b, qi, 0)),            # out (f32)
        ),
        scratch_shapes=[
            pltpu.VMEM((S, D), jnp.bfloat16),                              # K cache
            pltpu.VMEM((S, D), jnp.bfloat16),                              # V cache
        ],
        compiler_params=pltpu.CompilerParams(
            dimension_semantics=("parallel", "arbitrary"),
            vmem_limit_bytes=vmem_limit_bytes),
    )(x_bf, wq_t, bq2, wk_t, bk2, wv_t, bv2)

    if s_pad != S:
        attn = attn[:, :S, :]
        out = out[:, :S, :]
    return attn, out


def _reference(x, wq, bq, wk, bk, wv, bv):
    D = x.shape[-1]
    q = x @ wq.T + bq
    k = x @ wk.T + bk
    v = x @ wv.T + bv
    scores = jnp.einsum("bqd,bkd->bqk", q, k) / (float(D) ** 0.5)
    attn = jax.nn.softmax(scores, axis=-1)
    out = jnp.einsum("bqk,bkd->bqd", attn, v)
    return attn, out


if __name__ == "__main__":
    B, S, D = 2, 8, 32
    key = jax.random.PRNGKey(0)
    kx, k1, k2, k3, k4, k5, k6 = jax.random.split(key, 7)

    x = jax.random.normal(kx, (B, S, D), dtype=jnp.float32)
    # deterministic parameter init (PyTorch Linear layout: weight (out, in), bias (out,))
    scale = 1.0 / (D ** 0.5)
    wq = jax.random.uniform(k1, (D, D), jnp.float32, -scale, scale)
    bq = jax.random.uniform(k2, (D,), jnp.float32, -scale, scale)
    wk = jax.random.uniform(k3, (D, D), jnp.float32, -scale, scale)
    bk = jax.random.uniform(k4, (D,), jnp.float32, -scale, scale)
    wv = jax.random.uniform(k5, (D, D), jnp.float32, -scale, scale)
    bv = jax.random.uniform(k6, (D,), jnp.float32, -scale, scale)

    # Single-tile path (TQ == S).
    attn, out = self_attention(x, wq, bq, wk, bk, wv, bv)
    jax.block_until_ready((attn, out))
    attn_ref, out_ref = _reference(x, wq, bq, wk, bk, wv, bv)
    assert jnp.allclose(attn.astype(jnp.float32), attn_ref, atol=3e-2, rtol=3e-2), "attn mismatch"
    assert jnp.allclose(out, out_ref, atol=3e-2, rtol=3e-2), "out mismatch"

    # Query-tiled path (TQ < S: padded queries sliced from the single x stream,
    # K/V projected once per batch element into VMEM scratch shared across tiles).
    S2 = 40
    x2 = jax.random.normal(jax.random.PRNGKey(1), (B, S2, D), dtype=jnp.float32)
    attn2, out2 = self_attention(x2, wq, bq, wk, bk, wv, bv, max_tq=16)
    jax.block_until_ready((attn2, out2))
    attn2_ref, out2_ref = _reference(x2, wq, bq, wk, bk, wv, bv)
    assert jnp.allclose(attn2.astype(jnp.float32), attn2_ref, atol=3e-2, rtol=3e-2), "tiled attn mismatch"
    assert jnp.allclose(out2, out2_ref, atol=3e-2, rtol=3e-2), "tiled out mismatch"

    print("KERNEL_OK")
</pallas_src>

<mosaic_0001>
module attributes {stable_mosaic.version = 11 : i64} {
  func.func @kernel(%arg0: i32, %arg1: i32, %arg2: memref<1x8x32xbf16, #tpu.memory_space<vmem>>, %arg3: memref<32x32xbf16, #tpu.memory_space<vmem>>, %arg4: memref<1x32xf32, #tpu.memory_space<vmem>>, %arg5: memref<32x32xbf16, #tpu.memory_space<vmem>>, %arg6: memref<1x32xf32, #tpu.memory_space<vmem>>, %arg7: memref<32x32xbf16, #tpu.memory_space<vmem>>, %arg8: memref<1x32xf32, #tpu.memory_space<vmem>>, %arg9: memref<1x8x8xbf16, #tpu.memory_space<vmem>>, %arg10: memref<1x8x32xf32, #tpu.memory_space<vmem>>, %arg11: memref<8x32xbf16, #tpu.memory_space<vmem>>, %arg12: memref<8x32xbf16, #tpu.memory_space<vmem>>) attributes {dimension_semantics = [#tpu.dimension_semantics<parallel>, #tpu.dimension_semantics<arbitrary>], iteration_bounds = array<i64: 2, 1>, scalar_prefetch = 0 : i64, scratch_operands = 2 : i64, tpu.core_type = #tpu.core_type<tc>, window_params = [{transform_indices = @transform_0, window_bounds = array<i64: 1, 8, 32>}, {pipeline_mode = #tpu.pipeline_mode<synchronous>, transform_indices = @transform_1, window_bounds = array<i64: 32, 32>}, {pipeline_mode = #tpu.pipeline_mode<synchronous>, transform_indices = @transform_2, window_bounds = array<i64: 1, 32>}, {pipeline_mode = #tpu.pipeline_mode<synchronous>, transform_indices = @transform_3, window_bounds = array<i64: 32, 32>}, {pipeline_mode = #tpu.pipeline_mode<synchronous>, transform_indices = @transform_4, window_bounds = array<i64: 1, 32>}, {pipeline_mode = #tpu.pipeline_mode<synchronous>, transform_indices = @transform_5, window_bounds = array<i64: 32, 32>}, {pipeline_mode = #tpu.pipeline_mode<synchronous>, transform_indices = @transform_6, window_bounds = array<i64: 1, 32>}, {transform_indices = @transform_7, window_bounds = array<i64: 1, 8, 8>}, {transform_indices = @transform_8, window_bounds = array<i64: 1, 8, 32>}]} {
    %c0_i32 = arith.constant 0 : i32
    %0 = arith.cmpi eq, %arg1, %c0_i32 : i32
    %1 = arith.extui %0 : i1 to i32
    %c0_i32_0 = arith.constant 0 : i32
    %2 = arith.cmpi ne, %1, %c0_i32_0 : i32
    scf.if %2 {
      %c0_20 = arith.constant 0 : index
      %c0_21 = arith.constant 0 : index
      %c0_22 = arith.constant 0 : index
      %36 = vector.load %arg2[%c0_20, %c0_21, %c0_22] : memref<1x8x32xbf16, #tpu.memory_space<vmem>>, vector<1x8x32xbf16>
      %37 = vector.shape_cast %36 : vector<1x8x32xbf16> to vector<8x32xbf16>
      %c0_23 = arith.constant 0 : index
      %c0_24 = arith.constant 0 : index
      %38 = vector.load %arg5[%c0_23, %c0_24] : memref<32x32xbf16, #tpu.memory_space<vmem>>, vector<32x32xbf16>
      %cst_25 = arith.constant dense<0.000000e+00> : vector<8x32xf32>
      %39 = tpu.matmul %37, %38, %cst_25 {dimension_numbers = #tpu.dot_dimension_numbers<[1], [0], [0], [1], [0, 0, 1, 1], [], []>} : vector<8x32xbf16>, vector<32x32xbf16>, vector<8x32xf32> -> vector<8x32xf32>
      %c0_26 = arith.constant 0 : index
      %c0_27 = arith.constant 0 : index
      %40 = vector.load %arg6[%c0_26, %c0_27] : memref<1x32xf32, #tpu.memory_space<vmem>>, vector<1x32xf32>
      %41 = vector.broadcast %40 : vector<1x32xf32> to vector<8x32xf32>
      %42 = arith.addf %39, %41 : vector<8x32xf32>
      %c0_28 = arith.constant 0 : index
      %c0_29 = arith.constant 0 : index
      %43 = vector.load %arg7[%c0_28, %c0_29] : memref<32x32xbf16, #tpu.memory_space<vmem>>, vector<32x32xbf16>
      %cst_30 = arith.constant dense<0.000000e+00> : vector<8x32xf32>
      %44 = tpu.matmul %37, %43, %cst_30 {dimension_numbers = #tpu.dot_dimension_numbers<[1], [0], [0], [1], [0, 0, 1, 1], [], []>} : vector<8x32xbf16>, vector<32x32xbf16>, vector<8x32xf32> -> vector<8x32xf32>
      %c0_31 = arith.constant 0 : index
      %c0_32 = arith.constant 0 : index
      %45 = vector.load %arg8[%c0_31, %c0_32] : memref<1x32xf32, #tpu.memory_space<vmem>>, vector<1x32xf32>
      %46 = vector.broadcast %45 : vector<1x32xf32> to vector<8x32xf32>
      %47 = arith.addf %44, %46 : vector<8x32xf32>
      %48 = arith.truncf %42 : vector<8x32xf32> to vector<8x32xbf16>
      %c0_33 = arith.constant 0 : index
      %c0_34 = arith.constant 0 : index
      %49 = vector.load %arg11[%c0_33, %c0_34] : memref<8x32xbf16, #tpu.memory_space<vmem>>, vector<8x32xbf16>
      tpu.vector_store %arg11[%c0_33, %c0_34], %48 {strides = array<i32>} : memref<8x32xbf16, #tpu.memory_space<vmem>>, vector<8x32xbf16>,
      %50 = arith.truncf %47 : vector<8x32xf32> to vector<8x32xbf16>
      %c0_35 = arith.constant 0 : index
      %c0_36 = arith.constant 0 : index
      %51 = vector.load %arg12[%c0_35, %c0_36] : memref<8x32xbf16, #tpu.memory_space<vmem>>, vector<8x32xbf16>
      tpu.vector_store %arg12[%c0_35, %c0_36], %50 {strides = array<i32>} : memref<8x32xbf16, #tpu.memory_space<vmem>>, vector<8x32xbf16>,
    } else {
    }
    %c8_i32 = arith.constant 8 : i32
    %3 = arith.muli %arg1, %c8_i32 : i32
    %4 = tpu.assume_multiple %3, 8 : i32
    %c0 = arith.constant 0 : index
    %5 = arith.index_cast %4 : i32 to index
    %c0_1 = arith.constant 0 : index
    %6 = vector.load %arg2[%c0, %5, %c0_1] : memref<1x8x32xbf16, #tpu.memory_space<vmem>>, vector<1x8x32xbf16>
    %7 = vector.shape_cast %6 : vector<1x8x32xbf16> to vector<8x32xbf16>
    %c0_2 = arith.constant 0 : index
    %c0_3 = arith.constant 0 : index
    %8 = vector.load %arg3[%c0_2, %c0_3] : memref<32x32xbf16, #tpu.memory_space<vmem>>, vector<32x32xbf16>
    %cst = arith.constant dense<0.000000e+00> : vector<8x32xf32>
    %9 = tpu.matmul %7, %8, %cst {dimension_numbers = #tpu.dot_dimension_numbers<[1], [0], [0], [1], [0, 0, 1, 1], [], []>} : vector<8x32xbf16>, vector<32x32xbf16>, vector<8x32xf32> -> vector<8x32xf32>
    %c0_4 = arith.constant 0 : index
    %c0_5 = arith.constant 0 : index
    %10 = vector.load %arg4[%c0_4, %c0_5] : memref<1x32xf32, #tpu.memory_space<vmem>>, vector<1x32xf32>
    %11 = vector.broadcast %10 : vector<1x32xf32> to vector<8x32xf32>
    %12 = arith.addf %9, %11 : vector<8x32xf32>
    %13 = arith.truncf %12 : vector<8x32xf32> to vector<8x32xbf16>
    %c0_6 = arith.constant 0 : index
    %c0_7 = arith.constant 0 : index
    %14 = vector.load %arg11[%c0_6, %c0_7] : memref<8x32xbf16, #tpu.memory_space<vmem>>, vector<8x32xbf16>
    %cst_8 = arith.constant dense<0.000000e+00> : vector<8x8xf32>
    %15 = tpu.matmul %13, %14, %cst_8 {dimension_numbers = #tpu.dot_dimension_numbers<[1], [1], [0], [0], [0, 0, 1, 0], [], []>} : vector<8x32xbf16>, vector<8x32xbf16>, vector<8x8xf32> -> vector<8x8xf32>
    %cst_9 = arith.constant dense<0xFF800000> : vector<8xf32>
    %16 = vector.multi_reduction <maximumf>, %15, %cst_9 [1] : vector<8x8xf32> to vector<8xf32>
    %17 = vector.shape_cast %16 : vector<8xf32> to vector<8x1xf32>
    %18 = vector.broadcast %17 : vector<8x1xf32> to vector<8x8xf32>
    %19 = arith.subf %15, %18 : vector<8x8xf32>
    %20 = math.exp %19 : vector<8x8xf32>
    %cst_10 = arith.constant dense<0.000000e+00> : vector<8xf32>
    %21 = vector.multi_reduction <add>, %20, %cst_10 [1] : vector<8x8xf32> to vector<8xf32>
    %22 = vector.shape_cast %21 : vector<8xf32> to vector<8x1xf32>
    %23 = tpu.reciprocal %22 {approx = true} : vector<8x1xf32> -> vector<8x1xf32>
    %24 = vector.broadcast %23 : vector<8x1xf32> to vector<8x8xf32>
    %25 = arith.mulf %20, %24 : vector<8x8xf32>
    %26 = arith.truncf %25 : vector<8x8xf32> to vector<8x8xbf16>
    %c0_11 = arith.constant 0 : index
    %c0_12 = arith.constant 0 : index
    %27 = vector.load %arg12[%c0_11, %c0_12] : memref<8x32xbf16, #tpu.memory_space<vmem>>, vector<8x32xbf16>
    %cst_13 = arith.constant dense<0.000000e+00> : vector<8x32xf32>
    %28 = tpu.matmul %26, %27, %cst_13 {dimension_numbers = #tpu.dot_dimension_numbers<[1], [0], [0], [1], [0, 0, 1, 1], [], []>} : vector<8x8xbf16>, vector<8x32xbf16>, vector<8x32xf32> -> vector<8x32xf32>
    %29 = arith.truncf %25 : vector<8x8xf32> to vector<8x8xbf16>
    %c0_14 = arith.constant 0 : index
    %c0_15 = arith.constant 0 : index
    %c0_16 = arith.constant 0 : index
    %30 = vector.load %arg9[%c0_14, %c0_15, %c0_16] : memref<1x8x8xbf16, #tpu.memory_space<vmem>>, vector<1x8x8xbf16>
    %31 = vector.shape_cast %30 : vector<1x8x8xbf16> to vector<8x8xbf16>
    %32 = vector.shape_cast %29 : vector<8x8xbf16> to vector<1x8x8xbf16>
    tpu.vector_store %arg9[%c0_14, %c0_15, %c0_16], %32 {strides = array<i32>} : memref<1x8x8xbf16, #tpu.memory_space<vmem>>, vector<1x8x8xbf16>,
    %c0_17 = arith.constant 0 : index
    %c0_18 = arith.constant 0 : index
    %c0_19 = arith.constant 0 : index
    %33 = vector.load %arg10[%c0_17, %c0_18, %c0_19] : memref<1x8x32xf32, #tpu.memory_space<vmem>>, vector<1x8x32xf32>
    %34 = vector.shape_cast %33 : vector<1x8x32xf32> to vector<8x32xf32>
    %35 = vector.shape_cast %28 : vector<8x32xf32> to vector<1x8x32xf32>
    tpu.vector_store %arg10[%c0_17, %c0_18, %c0_19], %35 {strides = array<i32>} : memref<1x8x32xf32, #tpu.memory_space<vmem>>, vector<1x8x32xf32>,
    return
  }
  func.func @transform_0(%arg0: i32, %arg1: i32) -> (i32, i32, i32) {
    %c0_i32 = arith.constant 0 : i32
    %c0_i32_0 = arith.constant 0 : i32
    %c0_i32_1 = arith.constant 0 : i32
    return %arg0, %c0_i32, %c0_i32_0 : i32, i32, i32
  }
  func.func @transform_1(%arg0: i32, %arg1: i32) -> (i32, i32) {
    %c0_i32 = arith.constant 0 : i32
    %c0_i32_0 = arith.constant 0 : i32
    %c0_i32_1 = arith.constant 0 : i32
    return %c0_i32, %c0_i32_0 : i32, i32
  }
  func.func @transform_2(%arg0: i32, %arg1: i32) -> (i32, i32) {
    %c0_i32 = arith.constant 0 : i32
    %c0_i32_0 = arith.constant 0 : i32
    %c0_i32_1 = arith.constant 0 : i32
    return %c0_i32, %c0_i32_0 : i32, i32
  }
  func.func @transform_3(%arg0: i32, %arg1: i32) -> (i32, i32) {
    %c0_i32 = arith.constant 0 : i32
    %c0_i32_0 = arith.constant 0 : i32
    %c0_i32_1 = arith.constant 0 : i32
    return %c0_i32, %c0_i32_0 : i32, i32
  }
  func.func @transform_4(%arg0: i32, %arg1: i32) -> (i32, i32) {
    %c0_i32 = arith.constant 0 : i32
    %c0_i32_0 = arith.constant 0 : i32
    %c0_i32_1 = arith.constant 0 : i32
    return %c0_i32, %c0_i32_0 : i32, i32
  }
  func.func @transform_5(%arg0: i32, %arg1: i32) -> (i32, i32) {
    %c0_i32 = arith.constant 0 : i32
    %c0_i32_0 = arith.constant 0 : i32
    %c0_i32_1 = arith.constant 0 : i32
    return %c0_i32, %c0_i32_0 : i32, i32
  }
  func.func @transform_6(%arg0: i32, %arg1: i32) -> (i32, i32) {
    %c0_i32 = arith.constant 0 : i32
    %c0_i32_0 = arith.constant 0 : i32
    %c0_i32_1 = arith.constant 0 : i32
    return %c0_i32, %c0_i32_0 : i32, i32
  }
  func.func @transform_7(%arg0: i32, %arg1: i32) -> (i32, i32, i32) {
    %c0_i32 = arith.constant 0 : i32
    %c0_i32_0 = arith.constant 0 : i32
    return %arg0, %arg1, %c0_i32 : i32, i32, i32
  }
  func.func @transform_8(%arg0: i32, %arg1: i32) -> (i32, i32, i32) {
    %c0_i32 = arith.constant 0 : i32
    %c0_i32_0 = arith.constant 0 : i32
    return %arg0, %arg1, %c0_i32 : i32, i32, i32
  }
}

</mosaic_0001>

<llo_original>
// kernel: tpu_custom_call.1
$region0: #{tpu_custom_call.1}
  #allocation0 [shape = 'u32[]', space=smem, size = 0x4, offset = 0x4, fixed_abs, tag = 'smem constant byte address 0x4 - core index']
  #allocation1 [shape = 'u32[72,128]{1,0:T(1,128)}', space=vmem, size = 0x9000, scoped, tag = 'internal scratch']
  #allocation2 [shape = 'bf16[8,32]{1,0:T(8,128)(2,1)}', space=vmem, size = 0x800, scoped, tag = 'scratch operand']
  #allocation3 [shape = 'bf16[8,32]{1,0:T(8,128)(2,1)}', space=vmem, size = 0x800, scoped, tag = 'scratch operand']
  %s0 = inlined_call_operand.hbm [shape: bf16[2,8,32], index: 0, kind: input, shape index: {}]
  %s1 = inlined_call_operand.hbm [shape: bf16[32,32], index: 1, kind: input, shape index: {}]
  %s2 = inlined_call_operand.vmem [shape: f32[1,32], index: 2, kind: input, shape index: {}]
  %s3 = inlined_call_operand.hbm [shape: bf16[32,32], index: 3, kind: input, shape index: {}]
  %s4 = inlined_call_operand.vmem [shape: f32[1,32], index: 4, kind: input, shape index: {}]
  %s5 = inlined_call_operand.hbm [shape: bf16[32,32], index: 5, kind: input, shape index: {}]
  %s6 = inlined_call_operand.vmem [shape: f32[1,32], index: 6, kind: input, shape index: {}]
  %s7 = inlined_call_operand.hbm [shape: bf16[2,8,8], index: 7, kind: output, shape index: {0}]
  %s8 = inlined_call_operand.hbm [shape: f32[2,8,32], index: 8, kind: output, shape index: {1}]
  %9 = xla_tuple %s7, %s8
  %s10 = sld [smem:[#allocation0]]
  $region89: #{tpu_custom_call.1} parent=0
    _
  %s12 = ssub.s32 1, %s10
  %s13 = scalar_select 0, %s12, %s10
  $region1: #{tpu_custom_call.1} parent=0
    #allocation4 [shape = 'u8[4096]{0}', space=vmem, size = 0x1000, scoped, tag = 'input window, operand 0']
    #allocation5 [shape = 's32[2]{0}', space=sflag, size = 0x8, scoped, tag = 'scoped memory for tpu_custom_call.1']
    #allocation6 [shape = 's32[2]{0}', space=sflag, size = 0x8, scoped, tag = 'scoped memory for tpu_custom_call.1']
    #allocation7 [shape = 'u8[8192]{0}', space=vmem, size = 0x2000, scoped, tag = 'input window, operand 1, single buffered']
    #allocation8 [shape = 's32[1]{0}', space=sflag, size = 0x4, scoped, tag = 'scoped memory for tpu_custom_call.1']
    #allocation9 [shape = 'u8[8192]{0}', space=vmem, size = 0x2000, scoped, tag = 'input window, operand 3, single buffered']
    #allocation10 [shape = 'u8[8192]{0}', space=vmem, size = 0x2000, scoped, tag = 'input window, operand 5, single buffered']
    #allocation11 [shape = 's32[1]{0}', space=sflag, size = 0x4, scoped, tag = 'scoped memory for tpu_custom_call.1']
    #allocation12 [shape = 'u8[4096]{0}', space=vmem, size = 0x1000, scoped, tag = 'output window, operand 0']
    #allocation13 [shape = 'u8[8192]{0}', space=vmem, size = 0x2000, scoped, tag = 'output window, operand 1']
    #allocation14 [shape = 's32[2]{0}', space=sflag, size = 0x8, scoped, tag = 'scoped memory for tpu_custom_call.1']
    %14 = vsyncpa [#allocation5], 0
    %s15 = scalar_lea.sflag [#allocation5], 1
    %16 = vsyncpa %s15, 0
    %17 = vsyncpa [#allocation8], 0
    %18 = vsyncpa [#allocation11], 0
    %19 = vsyncpa [#allocation6], 0
    %s20 = scalar_lea.sflag [#allocation6], 1
    %21 = vsyncpa %s20, 0
    %22 = vsyncpa [#allocation14], 0
    %s23 = scalar_lea.sflag [#allocation14], 1
    %24 = vsyncpa %s23, 0
    loop: start=0, step=1, limit=4
    $region2: #{tpu_custom_call.1} parent=1 // loop_pre_header
      _
    $region3: #{tpu_custom_call.1} parent=1 // loop_header
      %s26 = sphi 0, %s30
      %p27 = scmp.ge.s32.totalorder %s26, 4
      %s33 = sphi 0, %s45
      %s34 = sphi 0, %s41
      %s35 = sphi 0, %s33
      %s36 = sphi 0, %s34
      %s37 = sphi 0, %s35
      %s38 = sphi 0, %s36
      %s48 = sphi 0, %s50
      %s51 = sphi 0, %s48
      %s52 = sphi 0, %s51
      %s68 = sphi 0, %s52
      %s72 = sphi 0, %s72
      %s74 = sphi 0, %s72
      %s75 = sphi 0, %s74
      %s89 = sphi 0, %s75
      %s93 = sphi 0, %s93
      %s95 = sphi 0, %s93
      %s96 = sphi 0, %s95
      %s110 = sphi 0, %s96
      %s114 = sphi 0, %s114
      %s116 = sphi 0, %s114
      %s117 = sphi 0, %s116
      %s131 = sphi 0, %s117
      %s135 = sphi 0, %s135
      %s137 = sphi 0, %s135
      %s138 = sphi 0, %s137
      %s152 = sphi 0, %s138
      %s156 = sphi 0, %s156
      %s158 = sphi 0, %s156
      %s159 = sphi 0, %s158
      %s173 = sphi 0, %s159
      %s177 = sphi 0, %s177
      %s179 = sphi 0, %s177
      %s180 = sphi 0, %s179
      %s194 = sphi 0, %s180
      %s202 = sphi 0, %s204
      %s205 = sphi 0, %s202
      %s206 = sphi 0, %s205
      %s222 = sphi 0, %s206
      %s230 = sphi 0, %s232
      %s233 = sphi 0, %s230
      %s234 = sphi 0, %s233
      %s250 = sphi 0, %s234
    $region4: #{tpu_custom_call.1} parent=1 // loop_header_branch
      %29 = sbr.rel (%p27) target = $region8
    $region5: #{tpu_custom_call.1} parent=1 // loop_body
      %s31 = ssub.s32 %s26, 1
      %s32 = ssub.s32 %s26, 2
      %s39 = sadd.s32 1, %s34
      %p40 = scmp.ge.s32.totalorder %s39, 1
      %s41 = scalar_select %p40, 0, %s39
      %s42 = sadd.s32 1, %s33
      %s43 = scalar_select %p40, %s42, %s33
      %p44 = scmp.ge.s32.totalorder %s43, 2
      %s45 = scalar_select %p44, 0, %s43
      %s46 = ssub.s32 %s33, %s45
      %p47 = scmp.eq.s32.totalorder %s46, 0
      %s49 = sadd.s32 %s48, 1
      %s50 = scalar_select %p47, %s48, %s49
      %p53 = pneg %p47
      %p54 = scmp.eq.s32.totalorder %s26, 1
      %p55 = por %p53, %p54
      %p56 = scmp.ne.s32.totalorder %s48, %s51
      %p57 = scmp.eq.s32.totalorder %s26, 0
      %p58 = por %p56, %p57
      %p59 = scmp.ne.s32.totalorder %s48, %s51
      %p60 = scmp.eq.s32.totalorder %s31, 1
      %p61 = por %p59, %p60
      %p62 = scmp.ne.s32.totalorder %s51, %s52
      %p63 = scmp.eq.s32.totalorder %s31, 0
      %p64 = por %p62, %p63
      %p65 = scmp.ne.s32.totalorder %s51, %s52
      %p66 = scmp.eq.s32.totalorder %s32, 1
      %p67 = por %p65, %p66
      %p69 = scmp.ne.s32.totalorder %s52, %s68
      %p70 = scmp.eq.s32.totalorder %s32, 0
      %p71 = por %p69, %p70
      %s73 = sadd.s32 %s72, 1
      %p76 = scmp.eq.s32.totalorder %s26, 1
      %p77 = scmp.ne.s32.totalorder %s72, %s74
      %p78 = scmp.eq.s32.totalorder %s26, 0
      %p79 = por %p77, %p78
      %p80 = scmp.ne.s32.totalorder %s72, %s74
      %p81 = scmp.eq.s32.totalorder %s31, 1
      %p82 = por %p80, %p81
      %p83 = scmp.ne.s32.totalorder %s74, %s75
      %p84 = scmp.eq.s32.totalorder %s31, 0
      %p85 = por %p83, %p84
      %p86 = scmp.ne.s32.totalorder %s74, %s75
      %p87 = scmp.eq.s32.totalorder %s32, 1
      %p88 = por %p86, %p87
      %p90 = scmp.ne.s32.totalorder %s75, %s89
      %p91 = scmp.eq.s32.totalorder %s32, 0
      %p92 = por %p90, %p91
      %s94 = sadd.s32 %s93, 1
      %p97 = scmp.eq.s32.totalorder %s26, 1
      %p98 = scmp.ne.s32.totalorder %s93, %s95
      %p99 = scmp.eq.s32.totalorder %s26, 0
      %p100 = por %p98, %p99
      %p101 = scmp.ne.s32.totalorder %s93, %s95
      %p102 = scmp.eq.s32.totalorder %s31, 1
      %p103 = por %p101, %p102
      %p104 = scmp.ne.s32.totalorder %s95, %s96
      %p105 = scmp.eq.s32.totalorder %s31, 0
      %p106 = por %p104, %p105
      %p107 = scmp.ne.s32.totalorder %s95, %s96
      %p108 = scmp.eq.s32.totalorder %s32, 1
      %p109 = por %p107, %p108
      %p111 = scmp.ne.s32.totalorder %s96, %s110
      %p112 = scmp.eq.s32.totalorder %s32, 0
      %p113 = por %p111, %p112
      %s115 = sadd.s32 %s114, 1
      %p118 = scmp.eq.s32.totalorder %s26, 1
      %p119 = scmp.ne.s32.totalorder %s114, %s116
      %p120 = scmp.eq.s32.totalorder %s26, 0
      %p121 = por %p119, %p120
      %p122 = scmp.ne.s32.totalorder %s114, %s116
      %p123 = scmp.eq.s32.totalorder %s31, 1
      %p124 = por %p122, %p123
      %p125 = scmp.ne.s32.totalorder %s116, %s117
      %p126 = scmp.eq.s32.totalorder %s31, 0
      %p127 = por %p125, %p126
      %p128 = scmp.ne.s32.totalorder %s116, %s117
      %p129 = scmp.eq.s32.totalorder %s32, 1
      %p130 = por %p128, %p129
      %p132 = scmp.ne.s32.totalorder %s117, %s131
      %p133 = scmp.eq.s32.totalorder %s32, 0
      %p134 = por %p132, %p133
      %s136 = sadd.s32 %s135, 1
      %p139 = scmp.eq.s32.totalorder %s26, 1
      %p140 = scmp.ne.s32.totalorder %s135, %s137
      %p141 = scmp.eq.s32.totalorder %s26, 0
      %p142 = por %p140, %p141
      %p143 = scmp.ne.s32.totalorder %s135, %s137
      %p144 = scmp.eq.s32.totalorder %s31, 1
      %p145 = por %p143, %p144
      %p146 = scmp.ne.s32.totalorder %s137, %s138
      %p147 = scmp.eq.s32.totalorder %s31, 0
      %p148 = por %p146, %p147
      %p149 = scmp.ne.s32.totalorder %s137, %s138
      %p150 = scmp.eq.s32.totalorder %s32, 1
      %p151 = por %p149, %p150
      %p153 = scmp.ne.s32.totalorder %s138, %s152
      %p154 = scmp.eq.s32.totalorder %s32, 0
      %p155 = por %p153, %p154
      %s157 = sadd.s32 %s156, 1
      %p160 = scmp.eq.s32.totalorder %s26, 1
      %p161 = scmp.ne.s32.totalorder %s156, %s158
      %p162 = scmp.eq.s32.totalorder %s26, 0
      %p163 = por %p161, %p162
      %p164 = scmp.ne.s32.totalorder %s156, %s158
      %p165 = scmp.eq.s32.totalorder %s31, 1
      %p166 = por %p164, %p165
      %p167 = scmp.ne.s32.totalorder %s158, %s159
      %p168 = scmp.eq.s32.totalorder %s31, 0
      %p169 = por %p167, %p168
      %p170 = scmp.ne.s32.totalorder %s158, %s159
      %p171 = scmp.eq.s32.totalorder %s32, 1
      %p172 = por %p170, %p171
      %p174 = scmp.ne.s32.totalorder %s159, %s173
      %p175 = scmp.eq.s32.totalorder %s32, 0
      %p176 = por %p174, %p175
      %s178 = sadd.s32 %s177, 1
      %p181 = scmp.eq.s32.totalorder %s26, 1
      %p182 = scmp.ne.s32.totalorder %s177, %s179
      %p183 = scmp.eq.s32.totalorder %s26, 0
      %p184 = por %p182, %p183
      %p185 = scmp.ne.s32.totalorder %s177, %s179
      %p186 = scmp.eq.s32.totalorder %s31, 1
      %p187 = por %p185, %p186
      %p188 = scmp.ne.s32.totalorder %s179, %s180
      %p189 = scmp.eq.s32.totalorder %s31, 0
      %p190 = por %p188, %p189
      %p191 = scmp.ne.s32.totalorder %s179, %s180
      %p192 = scmp.eq.s32.totalorder %s32, 1
      %p193 = por %p191, %p192
      %p195 = scmp.ne.s32.totalorder %s180, %s194
      %p196 = scmp.eq.s32.totalorder %s32, 0
      %p197 = por %p195, %p196
      %s198 = ssub.s32 %s33, %s45
      %s199 = ssub.s32 %s34, %s41
      %s200 = sor.u32 %s198, %s199
      %p201 = scmp.eq.s32.totalorder %s200, 0
      %s203 = sadd.s32 %s202, 1
      %s204 = scalar_select %p201, %s202, %s203
      %p207 = pneg %p201
      %p208 = scmp.eq.s32.totalorder %s26, 1
      %p209 = por %p207, %p208
      %p210 = scmp.ne.s32.totalorder %s202, %s205
      %p211 = scmp.eq.s32.totalorder %s26, 0
      %p212 = por %p210, %p211
      %p213 = scmp.ne.s32.totalorder %s202, %s205
      %p214 = scmp.eq.s32.totalorder %s31, 1
      %p215 = por %p213, %p214
      %p216 = scmp.ne.s32.totalorder %s205, %s206
      %p217 = scmp.eq.s32.totalorder %s31, 0
      %p218 = por %p216, %p217
      %p219 = scmp.ne.s32.totalorder %s205, %s206
      %p220 = scmp.eq.s32.totalorder %s32, 1
      %p221 = por %p219, %p220
      %p223 = scmp.ne.s32.totalorder %s206, %s222
      %p224 = scmp.eq.s32.totalorder %s32, 0
      %p225 = por %p223, %p224
      %s226 = ssub.s32 %s33, %s45
      %s227 = ssub.s32 %s34, %s41
      %s228 = sor.u32 %s226, %s227
      %p229 = scmp.eq.s32.totalorder %s228, 0
      %s231 = sadd.s32 %s230, 1
      %s232 = scalar_select %p229, %s230, %s231
      %p235 = pneg %p229
      %p236 = scmp.eq.s32.totalorder %s26, 1
      %p237 = por %p235, %p236
      %p238 = scmp.ne.s32.totalorder %s230, %s233
      %p239 = scmp.eq.s32.totalorder %s26, 0
      %p240 = por %p238, %p239
      %p241 = scmp.ne.s32.totalorder %s230, %s233
      %p242 = scmp.eq.s32.totalorder %s31, 1
      %p243 = por %p241, %p242
      %p244 = scmp.ne.s32.totalorder %s233, %s234
      %p245 = scmp.eq.s32.totalorder %s31, 0
      %p246 = por %p244, %p245
      %p247 = scmp.ne.s32.totalorder %s233, %s234
      %p248 = scmp.eq.s32.totalorder %s32, 1
      %p249 = por %p247, %p248
      %p251 = scmp.ne.s32.totalorder %s234, %s250
      %p252 = scmp.eq.s32.totalorder %s32, 0
      %p253 = por %p251, %p252
      %p254 = scmp.le.s32.totalorder 1, %s26
      %p255 = scmp.lt.s32.totalorder %s26, 3
      %p256 = pnand %p254, %p255
      %p257 = pneg %p256
      // Predicated region
      $region9: #{tpu_custom_call.1} parent=5 // pred_check
        _
      $region10: #{tpu_custom_call.1} parent=5 // pred_check_branch
        %259 = sbr.rel (%p256) target = $region12
      $region11: #{tpu_custom_call.1} parent=5 // pred_region
        %s260 = ssub.s32 %s26, 1
        // Predicated region
        $region13: #{tpu_custom_call.1} parent=11 // pred_check
          %p261 = pneg %p85
        $region14: #{tpu_custom_call.1} parent=11 // pred_check_branch
          %263 = sbr.rel (%p261) target = $region16
        $region15: #{tpu_custom_call.1} parent=11 // pred_region
          %265 = vsyncadd [#allocation8], 0
          %s266 = sshll.u32 %s1, 4
          %s267 = int_to_ptr.hbm [resolvable:$true] %s266
          %s268 = sshll.u32 [#allocation7], 4
          %s269 = int_to_ptr.vmem [resolvable:$true] %s268
          %274 = dma.hbm_to_vmem [thread:$0]  %s267, 256, %s269, [#allocation8], 64, 64, 4
        $region16: #{tpu_custom_call.1} parent=11 // pred_fallthru
          _
        // Predicated region
        $region17: #{tpu_custom_call.1} parent=11 // pred_check
          %p275 = pneg %p106
        $region18: #{tpu_custom_call.1} parent=11 // pred_check_branch
          %277 = sbr.rel (%p275) target = $region20
        $region19: #{tpu_custom_call.1} parent=11 // pred_region
          _
        $region20: #{tpu_custom_call.1} parent=11 // pred_fallthru
          _
        // Predicated region
        $region21: #{tpu_custom_call.1} parent=11 // pred_check
          %p278 = pneg %p127
        $region22: #{tpu_custom_call.1} parent=11 // pred_check_branch
          %280 = sbr.rel (%p278) target = $region24
        $region23: #{tpu_custom_call.1} parent=11 // pred_region
          %282 = vsyncadd [#allocation8], 0
          %s283 = sshll.u32 %s3, 4
          %s284 = int_to_ptr.hbm [resolvable:$true] %s283
          %s285 = sshll.u32 [#allocation9], 4
          %s286 = int_to_ptr.vmem [resolvable:$true] %s285
          %291 = dma.hbm_to_vmem [thread:$0]  %s284, 256, %s286, [#allocation8], 64, 64, 4
        $region24: #{tpu_custom_call.1} parent=11 // pred_fallthru
          _
        // Predicated region
        $region25: #{tpu_custom_call.1} parent=11 // pred_check
          %p292 = pneg %p148
        $region26: #{tpu_custom_call.1} parent=11 // pred_check_branch
          %294 = sbr.rel (%p292) target = $region28
        $region27: #{tpu_custom_call.1} parent=11 // pred_region
          _
        $region28: #{tpu_custom_call.1} parent=11 // pred_fallthru
          _
        // Predicated region
        $region29: #{tpu_custom_call.1} parent=11 // pred_check
          %p295 = pneg %p169
        $region30: #{tpu_custom_call.1} parent=11 // pred_check_branch
          %297 = sbr.rel (%p295) target = $region32
        $region31: #{tpu_custom_call.1} parent=11 // pred_region
          %299 = vsyncadd [#allocation11], 0
          %s300 = sshll.u32 %s5, 4
          %s301 = int_to_ptr.hbm [resolvable:$true] %s300
          %s302 = sshll.u32 [#allocation10], 4
          %s303 = int_to_ptr.vmem [resolvable:$true] %s302
          %308 = dma.hbm_to_vmem [thread:$0]  %s301, 256, %s303, [#allocation11], 64, 64, 4
        $region32: #{tpu_custom_call.1} parent=11 // pred_fallthru
          _
        // Predicated region
        $region33: #{tpu_custom_call.1} parent=11 // pred_check
          %p309 = pneg %p190
        $region34: #{tpu_custom_call.1} parent=11 // pred_check_branch
          %311 = sbr.rel (%p309) target = $region36
        $region35: #{tpu_custom_call.1} parent=11 // pred_region
          _
        $region36: #{tpu_custom_call.1} parent=11 // pred_fallthru
          _
      $region12: #{tpu_custom_call.1} parent=5 // pred_fallthru
        _
      %p312 = scmp.lt.s32.totalorder %s26, 2
      // Predicated region
      $region37: #{tpu_custom_call.1} parent=5 // pred_check
        %p313 = pneg %p312
      $region38: #{tpu_custom_call.1} parent=5 // pred_check_branch
        %315 = sbr.rel (%p313) target = $region40
      $region39: #{tpu_custom_call.1} parent=5 // pred_region
        // Predicated region
        $region41: #{tpu_custom_call.1} parent=39 // pred_check
          %p316 = pneg %p58
        $region42: #{tpu_custom_call.1} parent=39 // pred_check_branch
          %318 = sbr.rel (%p316) target = $region44
        $region43: #{tpu_custom_call.1} parent=39 // pred_region
          %s319 = sand.u32 %s48, 1
          %s320 = scalar_lea.sflag [#allocation5], %s319
          %s321 = sand.u32 %s48, 1
          %s322 = smul.addr %s321, 4
          %s323 = scalar_lea.vmem [#allocation4], %s322
          %325 = vsyncadd %s320, 0
          %s326 = smul.addr %s33, 4
          %s327 = scalar_lea.hbm %s0, %s326
          %s329 = sshll.u32 %s327, 4
          %s330 = int_to_ptr.hbm [resolvable:$true] %s329
          %s331 = sshll.u32 %s323, 4
          %s332 = int_to_ptr.vmem [resolvable:$true] %s331
          %334 = dma.hbm_to_vmem [thread:$0]  %s330, 64, %s332, %s320
        $region44: #{tpu_custom_call.1} parent=39 // pred_fallthru
          _
      $region40: #{tpu_custom_call.1} parent=5 // pred_fallthru
        _
      %p335 = scmp.le.s32.totalorder 1, %s26
      %p336 = scmp.lt.s32.totalorder %s26, 3
      %p337 = pnand %p335, %p336
      %p338 = pneg %p337
      // Predicated region
      $region45: #{tpu_custom_call.1} parent=5 // pred_check
        _
      $region46: #{tpu_custom_call.1} parent=5 // pred_check_branch
        %340 = sbr.rel (%p337) target = $region48
      $region47: #{tpu_custom_call.1} parent=5 // pred_region
        %s341 = ssub.s32 %s26, 1
        %s342 = sand.u32 %s51, 1
        %s343 = scalar_lea.sflag [#allocation5], %s342
        %s344 = sand.u32 %s51, 1
        %s345 = smul.addr %s344, 4
        %s346 = scalar_lea.vmem [#allocation4], %s345
        // Predicated region
        $region49: #{tpu_custom_call.1} parent=47 // pred_check
          %p347 = pneg %p64
        $region50: #{tpu_custom_call.1} parent=47 // pred_check_branch
          %349 = sbr.rel (%p347) target = $region52
        $region51: #{tpu_custom_call.1} parent=47 // pred_region
          %351 = dma.done %s343, 64
        $region52: #{tpu_custom_call.1} parent=47 // pred_fallthru
          _
        // Predicated region
        $region53: #{tpu_custom_call.1} parent=47 // pred_check
          %p352 = pneg %p85
        $region54: #{tpu_custom_call.1} parent=47 // pred_check_branch
          %354 = sbr.rel (%p352) target = $region56
        $region55: #{tpu_custom_call.1} parent=47 // pred_region
          %356 = dma.done [#allocation8], 256
        $region56: #{tpu_custom_call.1} parent=47 // pred_fallthru
          _
        // Predicated region
        $region57: #{tpu_custom_call.1} parent=47 // pred_check
          %p357 = pneg %p127
        $region58: #{tpu_custom_call.1} parent=47 // pred_check_branch
          %359 = sbr.rel (%p357) target = $region60
        $region59: #{tpu_custom_call.1} parent=47 // pred_region
          %361 = dma.done [#allocation8], 256
        $region60: #{tpu_custom_call.1} parent=47 // pred_fallthru
          _
        // Predicated region
        $region61: #{tpu_custom_call.1} parent=47 // pred_check
          %p362 = pneg %p169
        $region62: #{tpu_custom_call.1} parent=47 // pred_check_branch
          %364 = sbr.rel (%p362) target = $region64
        $region63: #{tpu_custom_call.1} parent=47 // pred_region
          %366 = dma.done [#allocation11], 256
        $region64: #{tpu_custom_call.1} parent=47 // pred_fallthru
          _
        %s367 = sand.u32 %s51, 1
        %s368 = scalar_lea.sflag [#allocation5], %s367
        %s369 = sand.u32 %s51, 1
        %s370 = smul.addr %s369, 4
        %s371 = scalar_lea.vmem [#allocation4], %s370
        %p372 = pneg %p64
        %p373 = pneg %p61
        %p374 = pneg %p85
        %p375 = pneg %p82
        %p376 = pneg %p106
        %p377 = pneg %p103
        %p378 = pneg %p127
        %p379 = pneg %p124
        %p380 = pneg %p148
        %p381 = pneg %p145
        %p382 = pneg %p169
        %p383 = pneg %p166
        %p384 = pneg %p190
        %p385 = pneg %p187
        %p386 = pneg %p218
        %p387 = pneg %p215
        %s388 = sand.u32 %s205, 1
        %s389 = scalar_lea.sflag [#allocation6], %s388
        %s390 = sand.u32 %s205, 1
        %s391 = smul.addr %s390, 4
        %s392 = scalar_lea.vmem [#allocation12], %s391
        %p393 = pneg %p246
        %p394 = pneg %p243
        %s395 = sand.u32 %s233, 1
        %s396 = scalar_lea.sflag [#allocation14], %s395
        %s397 = sand.u32 %s233, 1
        %s398 = smul.addr %s397, 8
        %s399 = scalar_lea.vmem [#allocation13], %s398
        %p401 = scmp.eq.s32.totalorder %s36, 0
        // Predicated region
        $region65: #{tpu_custom_call.1} parent=47 // pred_check
          %p402 = pneg %p401
        $region66: #{tpu_custom_call.1} parent=47 // pred_check_branch
          %404 = sbr.rel (%p402) target = $region68
        $region67: #{tpu_custom_call.1} parent=47 // pred_region
          %v405 = vld [vmem:[%s346] sm:$0xf]
          %v406 = vld [vmem:[#allocation9] sm:$0xf]
          %v407 = vld [vmem:[#allocation9 + $0x4] sm:$0xf]
          %v408 = vld [vmem:[#allocation9 + $0x8] sm:$0xf]
          %v409 = vld [vmem:[#allocation9 + $0xc] sm:$0xf]
          %v410 = vld [vmem:[%s4] sm:$0x1]
          %v412 = vperm.slane %v410, 0
          %v418 = vunpack.c.l.b16 %v406
          %v419 = vunpack.c.l.b16 %v407
          %v420 = vunpack.c.l.b16 %v408
          %v421 = vunpack.c.l.b16 %v409
          %v422 = vpack.c.b16 %v419, %v418
          %v423 = vpack.c.b16 %v421, %v420
          %vm426 = vcmask 261120
          %v428 = vsel %vm426, %v405, 0
          %430 = vmatpush.bf16.msra.mxu0 0
          %431 = vmatpush.bf16.msra.mxu0 0
          %432 = vmatpush.bf16.msra.mxu0 0
          %433 = vmatpush.bf16.msra.mxu0 0
          %434 = vmatpush.bf16.msra.mxu0 0
          %435 = vmatpush.bf16.msra.mxu0 0
          %436 = vmatpush.bf16.msra.mxu0 %v423
          %437 = vmatpush.bf16.msra.mxu0 %v422
          %438 = vmatmul.bf16.gmra.mxu0 %v428
          %v439 = vpop.f32.mrf.mxu0
          %v440 = vadd.f32 %v412, %v439
          %v441 = vpop.f32.mrf.mxu0
          %442 = vdwg.mxu0
          %v443 = vld [vmem:[#allocation10] sm:$0xf]
          %v444 = vld [vmem:[#allocation10 + $0x4] sm:$0xf]
          %v445 = vld [vmem:[#allocation10 + $0x8] sm:$0xf]
          %v446 = vld [vmem:[#allocation10 + $0xc] sm:$0xf]
          %v447 = vld [vmem:[%s6] sm:$0x1]
          %v449 = vperm.slane %v447, 0
          %v455 = vunpack.c.l.b16 %v443
          %v456 = vunpack.c.l.b16 %v444
          %v457 = vunpack.c.l.b16 %v445
          %v458 = vunpack.c.l.b16 %v446
          %v459 = vpack.c.b16 %v456, %v455
          %v460 = vpack.c.b16 %v458, %v457
          %463 = vmatpush.bf16.msra.mxu0 0
          %464 = vmatpush.bf16.msra.mxu0 0
          %465 = vmatpush.bf16.msra.mxu0 0
          %466 = vmatpush.bf16.msra.mxu0 0
          %467 = vmatpush.bf16.msra.mxu0 0
          %468 = vmatpush.bf16.msra.mxu0 0
          %469 = vmatpush.bf16.msra.mxu0 %v460
          %470 = vmatpush.bf16.msra.mxu0 %v459
          %471 = vmatmul.bf16.gmra.mxu0 %v428
          %v472 = vpop.f32.mrf.mxu0
          %v473 = vadd.f32 %v449, %v472
          %v474 = vpop.f32.mrf.mxu0
          %475 = vdwg.mxu0
          %v476 = vpack.c.bf16 %v440, %v440
          %vm477 = vcmask 257024
          %478 = vst.msk [vmem:[#allocation2] sm:$0xf] %vm477, %v476
          %v479 = vpack.c.bf16 %v473, %v473
          %480 = vst.msk [vmem:[#allocation3] sm:$0xf] %vm477, %v479
        $region68: #{tpu_custom_call.1} parent=47 // pred_fallthru
          _
        %s481 = smul.u32 %s36, 8
        %s482 = sshra.s32 %s481, 3
        %s483 = sand.u32 %s481, 7
        %s484 = smul.addr %s482, 4
        %s485 = scalar_lea.vmem %s346, %s484 [#allocation4]
        %v486 = vld [vmem:[%s485] sm:$0xf]
        %v487 = vld [vmem:[#allocation7] sm:$0xf]
        %v488 = vld [vmem:[#allocation7 + $0x4] sm:$0xf]
        %v489 = vld [vmem:[#allocation7 + $0x8] sm:$0xf]
        %v490 = vld [vmem:[#allocation7 + $0xc] sm:$0xf]
        %v491 = vld [vmem:[%s2] sm:$0x1]
        %v493 = vperm.slane %v491, 0
        %v499 = vunpack.c.l.b16 %v487
        %v500 = vunpack.c.l.b16 %v488
        %v501 = vunpack.c.l.b16 %v489
        %v502 = vunpack.c.l.b16 %v490
        %v503 = vpack.c.b16 %v500, %v499
        %v504 = vpack.c.b16 %v502, %v501
        %vm507 = vcmask 261120
        %v509 = vsel %vm507, %v486, 0
        %511 = vmatpush.bf16.msra.mxu0 0
        %512 = vmatpush.bf16.msra.mxu0 0
        %513 = vmatpush.bf16.msra.mxu0 0
        %514 = vmatpush.bf16.msra.mxu0 0
        %515 = vmatpush.bf16.msra.mxu0 0
        %516 = vmatpush.bf16.msra.mxu0 0
        %517 = vmatpush.bf16.msra.mxu0 %v504
        %518 = vmatpush.bf16.msra.mxu0 %v503
        %519 = vmatmul.bf16.gmra.mxu0 %v509
        %v520 = vpop.f32.mrf.mxu0
        %v521 = vadd.f32 %v493, %v520
        %v522 = vpop.f32.mrf.mxu0
        %523 = vdwg.mxu0
        %v524 = vpack.c.bf16 %v521, %v521
        %v525 = vld [vmem:[#allocation2] sm:$0xf]
        %v527 = vsel %vm507, %v524, 0
        %v530 = vsel %vm507, %v525, 0
        %532 = vmatpush.bf16.xpose.msra.mxu0 0
        %533 = vmatpush.bf16.xpose.msra.mxu0 0
        %534 = vmatpush.bf16.xpose.msra.mxu0 0
        %535 = vmatpush.bf16.xpose.msra.mxu0 0
        %536 = vmatpush.bf16.xpose.msra.mxu0 0
        %537 = vmatpush.bf16.xpose.msra.mxu0 0
        %538 = vmatpush.bf16.xpose.msra.mxu0 0
        %539 = vmatpush.bf16.xpose.msra.mxu0 %v530
        %540 = vmatmul.bf16.gmra.mxu0 %v527
        %v541 = vpop.f32.mrf.mxu0
        %v542 = vadd.f32 0.0, %v541
        %v543 = vpop.f32.mrf.mxu0
        %544 = vdwg.mxu0
        %vm545 = vcmask 64512
        %v546 = vsel %vm545, %v542, -inf
        %547 = vmax.xlane.f32.xlu0 %v546
        %v548 = vpop.xlane.xlu0 %547
        %v549 = vsub.f32 %v542, %v548
        %v550 = vmul.f32 %v549, 1.442695
        %v551 = vpow.pop %v550
        %v552 = vsel %vm545, %v551, 0.0
        %553 = vadd.xlane.f32.xlu0 %v552
        %v554 = vpop.xlane.xlu0 %553
        %v555 = vrcp.pop %v554
        %v556 = vmul.f32 %v551, %v555
        %v557 = vpack.c.bf16 %v556, %v556
        %v558 = vld [vmem:[#allocation3] sm:$0xf]
        %v560 = vsel %vm545, %v557, 0
        %vm562 = vcmask 1043456
        %v564 = vsel %vm562, %v558, 0
        %566 = vmatpush.bf16.msra.mxu0 0
        %567 = vmatpush.bf16.msra.mxu0 0
        %568 = vmatpush.bf16.msra.mxu0 0
        %569 = vmatpush.bf16.msra.mxu0 0
        %570 = vmatpush.bf16.msra.mxu0 0
        %571 = vmatpush.bf16.msra.mxu0 0
        %572 = vmatpush.bf16.msra.mxu0 0
        %573 = vmatpush.bf16.msra.mxu0 %v564
        %574 = vmatmul.bf16.gmra.mxu0 %v560
        %v575 = vpop.f32.mrf.mxu0
        %v576 = vadd.f32 0.0, %v575
        %v577 = vpop.f32.mrf.mxu0
        %578 = vdwg.mxu0
        %vm579 = vcmask 60416
        %580 = vst.msk [vmem:[%s392] sm:$0xf] %vm579, %v557
        %581 = vst.msk [vmem:[%s399] sm:$0xff] %vm507, %v576
        %s582 = sand.u32 %s205, 1
        %s583 = scalar_lea.sflag [#allocation6], %s582
        %s584 = sand.u32 %s205, 1
        %s585 = smul.addr %s584, 4
        %s586 = scalar_lea.vmem [#allocation12], %s585
        %s587 = sand.u32 %s233, 1
        %s588 = scalar_lea.sflag [#allocation14], %s587
        %s589 = sand.u32 %s233, 1
        %s590 = smul.addr %s589, 8
        %s591 = scalar_lea.vmem [#allocation13], %s590
        // Predicated region
        $region69: #{tpu_custom_call.1} parent=47 // pred_check
          %p592 = pneg %p215
        $region70: #{tpu_custom_call.1} parent=47 // pred_check_branch
          %594 = sbr.rel (%p592) target = $region72
        $region71: #{tpu_custom_call.1} parent=47 // pred_region
          %596 = vsyncadd %s583, 0
          %s597 = sadd.s32 %s36, %s35
          %s598 = smul.addr %s597, 4
          %s599 = scalar_lea.hbm %s7, %s598
          %s601 = sshll.u32 %s586, 4
          %s602 = int_to_ptr.vmem [resolvable:$true] %s601
          %s603 = sshll.u32 %s599, 4
          %s604 = int_to_ptr.hbm [resolvable:$true] %s603
          %606 = dma.vmem_to_hbm [thread:$0]  %s602, 64, %s604, %s583
        $region72: #{tpu_custom_call.1} parent=47 // pred_fallthru
          _
        // Predicated region
        $region73: #{tpu_custom_call.1} parent=47 // pred_check
          %p607 = pneg %p243
        $region74: #{tpu_custom_call.1} parent=47 // pred_check_branch
          %609 = sbr.rel (%p607) target = $region76
        $region75: #{tpu_custom_call.1} parent=47 // pred_region
          %611 = vsyncadd %s588, 0
          %s612 = sadd.s32 %s36, %s35
          %s613 = smul.addr %s612, 8
          %s614 = scalar_lea.hbm %s8, %s613
          %s616 = sshll.u32 %s591, 4
          %s617 = int_to_ptr.vmem [resolvable:$true] %s616
          %s618 = sshll.u32 %s614, 4
          %s619 = int_to_ptr.hbm [resolvable:$true] %s618
          %621 = dma.vmem_to_hbm [thread:$0]  %s617, 128, %s619, %s588
        $region76: #{tpu_custom_call.1} parent=47 // pred_fallthru
          _
      $region48: #{tpu_custom_call.1} parent=5 // pred_fallthru
        _
      %p622 = scmp.le.s32.totalorder 2, %s26
      // Predicated region
      $region77: #{tpu_custom_call.1} parent=5 // pred_check
        %p623 = pneg %p622
      $region78: #{tpu_custom_call.1} parent=5 // pred_check_branch
        %625 = sbr.rel (%p623) target = $region80
      $region79: #{tpu_custom_call.1} parent=5 // pred_region
        %s626 = ssub.s32 %s26, 2
        // Predicated region
        $region81: #{tpu_custom_call.1} parent=79 // pred_check
          %p627 = pneg %p221
        $region82: #{tpu_custom_call.1} parent=79 // pred_check_branch
          %629 = sbr.rel (%p627) target = $region84
        $region83: #{tpu_custom_call.1} parent=79 // pred_region
          %s630 = sand.u32 %s206, 1
          %s631 = scalar_lea.sflag [#allocation6], %s630
          %s632 = sand.u32 %s206, 1
          %s633 = smul.addr %s632, 4
          %s634 = scalar_lea.vmem [#allocation12], %s633
          %636 = dma.done %s631, 64
        $region84: #{tpu_custom_call.1} parent=79 // pred_fallthru
          _
        // Predicated region
        $region85: #{tpu_custom_call.1} parent=79 // pred_check
          %p637 = pneg %p249
        $region86: #{tpu_custom_call.1} parent=79 // pred_check_branch
          %639 = sbr.rel (%p637) target = $region88
        $region87: #{tpu_custom_call.1} parent=79 // pred_region
          %s640 = sand.u32 %s234, 1
          %s641 = scalar_lea.sflag [#allocation14], %s640
          %s642 = sand.u32 %s234, 1
          %s643 = smul.addr %s642, 8
          %s644 = scalar_lea.vmem [#allocation13], %s643
          %646 = dma.done %s641, 128
        $region88: #{tpu_custom_call.1} parent=79 // pred_fallthru
          _
      $region80: #{tpu_custom_call.1} parent=5 // pred_fallthru
        _
    $region6: #{tpu_custom_call.1} parent=1 // loop_footer
      %s30 = sadd.s32 1, %s26
    $region7: #{tpu_custom_call.1} parent=1 // loop_footer_branch
      %25 = sbr.rel target = $region3
    $region8: #{tpu_custom_call.1} parent=1 // loop_exit
      _
    %647 = vsyncpa [#allocation5], 1
    %s648 = scalar_lea.sflag [#allocation5], 1
    %649 = vsyncpa %s648, 1
    %650 = vsyncpa [#allocation8], 1
    %651 = vsyncpa [#allocation11], 1
    %652 = vsyncpa [#allocation6], 1
    %s653 = scalar_lea.sflag [#allocation6], 1
    %654 = vsyncpa %s653, 1
    %655 = vsyncpa [#allocation14], 1
    %s656 = scalar_lea.sflag [#allocation14], 1
    %657 = vsyncpa %s656, 1

</llo_original>
